<compile_context>
chip_gen: v6e
topology: v6e:2x2x1
jax: 0.10.0
libtpu: 0.0.40
codegen_flags: <defaults>
</compile_context>

<pallas_src>
import functools
import math

import jax
import jax.numpy as jnp
from jax.experimental import pallas as pl
from jax.experimental.pallas import tpu as pltpu

EPS = 1e-5   # nn.LayerNorm default
LANE = 128


def residual_kernel(x_ref, gamma_ref, beta_ref, w_ref, b_ref, o_ref, y_ref, *,
                    inv_d, d_true, pad_cols, tn):
    """Grid = (row tiles, N tiles).  x_ref (tm, Dp) stays resident across j."""
    j = pl.program_id(1)

    # LayerNorm once per row tile (j == 0); result cached in VMEM scratch and
    # reused for every output-column tile of this row block.
    @pl.when(j == 0)
    def _():
        x = x_ref[...].astype(jnp.float32)
        mean = jnp.sum(x, axis=-1, keepdims=True) * inv_d
        xc = x - mean
        if pad_cols:
            # Zero-padded lanes hold 0; (0 - mean) must not pollute the
            # variance, so mask them out of the centered values.
            lane = jax.lax.broadcasted_iota(jnp.int32, x.shape, 1)
            xc = jnp.where(lane < d_true, xc, 0.0)
        # Two-pass variance (stable when |mean| >> std, unlike E[x^2]-E[x]^2).
        var = jnp.sum(xc * xc, axis=-1, keepdims=True) * inv_d
        x_norm = xc * jax.lax.rsqrt(var + EPS)
        y_ref[...] = (x_norm * gamma_ref[...] + beta_ref[...]).astype(y_ref.dtype)

    # Sublayer Linear on the MXU (f32 accumulation) + bias + residual add.
    out = jnp.dot(y_ref[...], w_ref[...], preferred_element_type=jnp.float32)
    out = out + b_ref[...]

    col0 = pl.multiple_of(j * tn, LANE)
    x_res = x_ref[:, pl.ds(col0, tn)].astype(jnp.float32)
    # TODO(synk): training-mode dropout (pltpu.prng_seed + Bernoulli mask with
    # 1/(1-p) scaling) is not implemented; inference semantics (identity) used.
    o_ref[...] = (x_res + out).astype(o_ref.dtype)


def _round_up(a, b):
    return (a + b - 1) // b * b


@functools.lru_cache(maxsize=1)
def _vmem_capacity_bytes():
    try:
        info = pltpu.get_tpu_info()
        cap = getattr(info, "vmem_capacity_bytes", None)
        if cap:
            return int(cap)
    except Exception:
        pass
    return 64 << 20   # conservative default (v7x per-TensorCore VMEM)


def _pick_tiles(rows, dp, x_item, mxu_item, capacity, tn_request):
    """Choose (tm, tn) and estimate the VMEM footprint."""
    budget = int(capacity * 0.7)

    # N tile: keep W fully resident (single-buffered) when it comfortably fits
    # (v5e/v6e, 128 MiB VMEM); otherwise tile the matmul N dim (v7x, 64 MiB).
    if tn_request is not None:
        tn = max(LANE, min(dp, _round_up(tn_request, LANE)))
    elif dp * dp * mxu_item <= budget // 2:
        tn = dp
    else:
        tn = (budget // 3) // (2 * dp * mxu_item)
        tn = max(LANE, min(dp, (tn // LANE) * LANE))
    while dp % tn:          # dp is a multiple of 128, so this terminates at 128
        tn -= LANE
    w_bytes = (1 if tn == dp else 2) * dp * tn * mxu_item

    # Row tile: as large as the budget allows (bigger tiles -> closer to HBM
    # roofline), multiple of 8, first block kept inside the array bounds.
    tm_max = rows if rows <= 8 else (rows // 8) * 8
    tm = min(512 if dp <= 2048 else 256, tm_max)
    while True:
        need = (2 * tm * dp * x_item      # x row tile, double-buffered
                + w_bytes                 # weight tile(s)
                + tm * dp * mxu_item      # LayerNorm VMEM scratch
                + 2 * tm * tn * x_item    # output tile, double-buffered
                + 12 * tm * dp            # in-kernel f32 intermediates headroom
                + (1 << 20))              # params + Mosaic internal scratch
        if need <= budget or tm <= 8:
            break
        tm = max(8, ((tm // 2) // 8) * 8)
    return tm, tn, need


def prepare_params(gamma, beta, w, b, mxu_dtype=jnp.bfloat16):
    """One-time (outside the hot path) padding + cast of the sublayer params.

    gamma/beta/b: [D]; w: [D, D].  Returns lane-padded (1, Dp)/(Dp, Dp) arrays;
    W is cast to the MXU operand dtype exactly once.
    """
    d = w.shape[0]
    dp = d if d % LANE == 0 else _round_up(d, LANE)
    pad = dp - d
    gamma_p = jnp.pad(gamma.astype(jnp.float32), (0, pad)).reshape(1, dp)
    beta_p = jnp.pad(beta.astype(jnp.float32), (0, pad)).reshape(1, dp)
    b_p = jnp.pad(b.astype(jnp.float32), (0, pad)).reshape(1, dp)
    w_p = jnp.pad(w.astype(jnp.float32), ((0, pad), (0, pad))).astype(mxu_dtype)
    return gamma_p, beta_p, w_p, b_p


@functools.partial(jax.jit, static_argnames=("tn_request",))
def residual_connection(x, gamma_p, beta_p, w_p, b_p, tn_request=None):
    """x: [..., D] -> [..., D]; params from prepare_params()."""
    orig_shape = x.shape
    D = orig_shape[-1]
    Dp = w_p.shape[0]
    R = math.prod(orig_shape[:-1])

    x2 = x.reshape(R, D)
    padded = Dp != D
    if padded:
        # Fallback for lane-unaligned d_model only.  Lane-aligned widths
        # (256/768/1024/4096/...) take the no-pad fast path: zero extra HBM
        # round-trips outside the kernel.
        x2 = jnp.pad(x2, ((0, 0), (0, Dp - D)))

    x_item = jnp.dtype(x2.dtype).itemsize
    mxu_item = jnp.dtype(w_p.dtype).itemsize
    capacity = _vmem_capacity_bytes()
    tm, tn, need = _pick_tiles(R, Dp, x_item, mxu_item, capacity, tn_request)
    grid = (pl.cdiv(R, tm), Dp // tn)
    vmem_limit = int(min(capacity, max(need + (16 << 20), 32 << 20)))

    # Single-buffer constant-index operands: their index_map never changes, so
    # a second pipeline buffer would only waste VMEM (matters for resident W).
    const_kw = {"pipeline_mode": pl.Buffered(1)} if hasattr(pl, "Buffered") else {}
    if tn == Dp:     # W / bias fully resident, fetched once for the whole grid
        w_spec = pl.BlockSpec((Dp, Dp), lambda i, j: (0, 0), **const_kw)
        b_spec = pl.BlockSpec((1, Dp), lambda i, j: (0, 0), **const_kw)
    else:            # N-tiled matmul: W column tiles stream, double-buffered
        w_spec = pl.BlockSpec((Dp, tn), lambda i, j: (0, j))
        b_spec = pl.BlockSpec((1, tn), lambda i, j: (0, j))

    kernel = functools.partial(residual_kernel, inv_d=1.0 / D, d_true=D,
                               pad_cols=Dp - D, tn=tn)

    out = pl.pallas_call(
        kernel,
        out_shape=jax.ShapeDtypeStruct((R, Dp), x2.dtype),
        grid_spec=pltpu.PrefetchScalarGridSpec(
            num_scalar_prefetch=0,
            grid=grid,
            in_specs=[
                pl.BlockSpec((tm, Dp), lambda i, j: (i, 0)),             # x rows
                pl.BlockSpec((1, Dp), lambda i, j: (0, 0), **const_kw),  # gamma
                pl.BlockSpec((1, Dp), lambda i, j: (0, 0), **const_kw),  # beta
                w_spec,                                                  # W
                b_spec,                                                  # bias
            ],
            out_specs=pl.BlockSpec((tm, tn), lambda i, j: (i, j)),
            scratch_shapes=[pltpu.VMEM((tm, Dp), w_p.dtype)],            # LN(x)
        ),
        compiler_params=pltpu.CompilerParams(
            dimension_semantics=("parallel", "arbitrary"),
            vmem_limit_bytes=vmem_limit),
        # Alias only when x2 is a fresh intermediate (the pad output).  In the
        # no-pad fast path aliasing the non-donated jit argument would force a
        # defensive copy; callers wanting in-place there should donate x.
        input_output_aliases={0: 0} if padded else {},
    )(x2, gamma_p, beta_p, w_p, b_p)

    if padded:
        out = out[:, :D]
    return out.reshape(orig_shape)


def _reference(x, gamma, beta, w, b):
    xf = x.astype(jnp.float32)
    mean = jnp.mean(xf, axis=-1, keepdims=True)
    var = jnp.mean((xf - mean) ** 2, axis=-1, keepdims=True)
    y = (xf - mean) * jax.lax.rsqrt(var + EPS) * gamma + beta
    out = y @ w.astype(jnp.float32) + b
    return (xf + out).astype(x.dtype)


if __name__ == "__main__":
    key = jax.random.PRNGKey(0)
    k1, k2, k3, k4 = jax.random.split(key, 4)

    # --- config 1: tiny d_model (lane-padded fallback path, bf16 MXU) ---
    batch, seq, d_model = 2, 8, 32
    x = jax.random.normal(k1, (batch, seq, d_model), dtype=jnp.float32)
    gamma = jnp.ones((d_model,), dtype=jnp.float32)   # PyTorch LayerNorm init
    beta = jnp.zeros((d_model,), dtype=jnp.float32)
    w = jax.random.normal(k2, (d_model, d_model), dtype=jnp.float32) * 0.05
    b = jax.random.normal(k3, (d_model,), dtype=jnp.float32) * 0.05

    params = prepare_params(gamma, beta, w, b, mxu_dtype=jnp.bfloat16)
    out = jax.block_until_ready(residual_connection(x, *params))
    ref = _reference(x, gamma, beta, w, b)
    assert out.shape == x.shape and out.dtype == x.dtype
    err = float(jnp.max(jnp.abs(out - ref)))
    assert jnp.allclose(out, ref, atol=3e-2, rtol=3e-2), err

    # --- config 2: lane-aligned d_model (no-pad fast path), forced N-tiling,
    #     non-divisible row count (partial edge tile), f32 MXU fallback ---
    batch2, seq2, d2 = 2, 13, 256
    x2 = jax.random.normal(k4, (batch2, seq2, d2), dtype=jnp.float32)
    gamma2 = 1.0 + 0.1 * jax.random.normal(jax.random.PRNGKey(1), (d2,), jnp.float32)
    beta2 = 0.1 * jax.random.normal(jax.random.PRNGKey(2), (d2,), jnp.float32)
    w2 = jax.random.normal(jax.random.PRNGKey(3), (d2, d2), jnp.float32) * 0.05
    b2 = jax.random.normal(jax.random.PRNGKey(4), (d2,), jnp.float32) * 0.05

    params2 = prepare_params(gamma2, beta2, w2, b2, mxu_dtype=jnp.float32)
    out2 = jax.block_until_ready(residual_connection(x2, *params2, tn_request=128))
    ref2 = _reference(x2, gamma2, beta2, w2, b2)
    err2 = float(jnp.max(jnp.abs(out2 - ref2)))
    assert out2.shape == x2.shape and jnp.allclose(out2, ref2, atol=3e-2, rtol=3e-2), err2

    print("KERNEL_OK")
</pallas_src>

<mosaic_0001>
module attributes {stable_mosaic.version = 11 : i64} {
  func.func @residual_kernel(%arg0: i32, %arg1: i32, %arg2: memref<16x128xf32, #tpu.memory_space<vmem>>, %arg3: memref<1x128xf32, #tpu.memory_space<vmem>>, %arg4: memref<1x128xf32, #tpu.memory_space<vmem>>, %arg5: memref<128x128xbf16, #tpu.memory_space<vmem>>, %arg6: memref<1x128xf32, #tpu.memory_space<vmem>>, %arg7: memref<16x128xf32, #tpu.memory_space<vmem>>, %arg8: memref<16x128xbf16, #tpu.memory_space<vmem>>) attributes {dimension_semantics = [#tpu.dimension_semantics<parallel>, #tpu.dimension_semantics<arbitrary>], iteration_bounds = array<i64: 1, 1>, scalar_prefetch = 0 : i64, scratch_operands = 1 : i64, tpu.core_type = #tpu.core_type<tc>, window_params = [{transform_indices = @transform_0, window_bounds = array<i64: 16, 128>}, {pipeline_mode = #tpu.pipeline_mode<synchronous>, transform_indices = @transform_1, window_bounds = array<i64: 1, 128>}, {pipeline_mode = #tpu.pipeline_mode<synchronous>, transform_indices = @transform_2, window_bounds = array<i64: 1, 128>}, {pipeline_mode = #tpu.pipeline_mode<synchronous>, transform_indices = @transform_3, window_bounds = array<i64: 128, 128>}, {pipeline_mode = #tpu.pipeline_mode<synchronous>, transform_indices = @transform_4, window_bounds = array<i64: 1, 128>}, {transform_indices = @transform_5, window_bounds = array<i64: 16, 128>}]} {
    %c0_i32 = arith.constant 0 : i32
    %0 = arith.cmpi eq, %arg1, %c0_i32 : i32
    %1 = arith.extui %0 : i1 to i32
    %c0_i32_0 = arith.constant 0 : i32
    %2 = arith.cmpi ne, %1, %c0_i32_0 : i32
    scf.if %2 {
      %c0_9 = arith.constant 0 : index
      %c0_10 = arith.constant 0 : index
      %15 = vector.load %arg2[%c0_9, %c0_10] : memref<16x128xf32, #tpu.memory_space<vmem>>, vector<16x128xf32>
      %cst_11 = arith.constant dense<0.000000e+00> : vector<16xf32>
      %16 = vector.multi_reduction <add>, %15, %cst_11 [1] : vector<16x128xf32> to vector<16xf32>
      %17 = vector.shape_cast %16 : vector<16xf32> to vector<16x1xf32>
      %cst_12 = arith.constant 3.125000e-02 : f32
      %18 = vector.broadcast %cst_12 : f32 to vector<16x1xf32>
      %19 = arith.mulf %17, %18 : vector<16x1xf32>
      %20 = vector.broadcast %19 : vector<16x1xf32> to vector<16x128xf32>
      %21 = arith.subf %15, %20 : vector<16x128xf32>
      %22 = tpu.iota {dimensions = array<i32: 1>} : vector<16x128xi32>
      %c32_i32 = arith.constant 32 : i32
      %23 = vector.broadcast %c32_i32 : i32 to vector<16x128xi32>
      %24 = arith.cmpi slt, %22, %23 : vector<16x128xi32>
      %cst_13 = arith.constant 0.000000e+00 : f32
      %25 = vector.broadcast %cst_13 : f32 to vector<16x128xf32>
      %26 = arith.select %24, %21, %25 : vector<16x128xi1>, vector<16x128xf32>
      %27 = arith.mulf %26, %26 : vector<16x128xf32>
      %cst_14 = arith.constant dense<0.000000e+00> : vector<16xf32>
      %28 = vector.multi_reduction <add>, %27, %cst_14 [1] : vector<16x128xf32> to vector<16xf32>
      %29 = vector.shape_cast %28 : vector<16xf32> to vector<16x1xf32>
      %cst_15 = arith.constant 3.125000e-02 : f32
      %30 = vector.broadcast %cst_15 : f32 to vector<16x1xf32>
      %31 = arith.mulf %29, %30 : vector<16x1xf32>
      %cst_16 = arith.constant 9.99999974E-6 : f32
      %32 = vector.broadcast %cst_16 : f32 to vector<16x1xf32>
      %33 = arith.addf %31, %32 : vector<16x1xf32>
      %34 = math.rsqrt %33 : vector<16x1xf32>
      %35 = vector.broadcast %34 : vector<16x1xf32> to vector<16x128xf32>
      %36 = arith.mulf %26, %35 : vector<16x128xf32>
      %c0_17 = arith.constant 0 : index
      %c0_18 = arith.constant 0 : index
      %37 = vector.load %arg3[%c0_17, %c0_18] : memref<1x128xf32, #tpu.memory_space<vmem>>, vector<1x128xf32>
      %38 = vector.broadcast %37 : vector<1x128xf32> to vector<16x128xf32>
      %39 = arith.mulf %36, %38 : vector<16x128xf32>
      %c0_19 = arith.constant 0 : index
      %c0_20 = arith.constant 0 : index
      %40 = vector.load %arg4[%c0_19, %c0_20] : memref<1x128xf32, #tpu.memory_space<vmem>>, vector<1x128xf32>
      %41 = vector.broadcast %40 : vector<1x128xf32> to vector<16x128xf32>
      %42 = arith.addf %39, %41 : vector<16x128xf32>
      %43 = arith.truncf %42 : vector<16x128xf32> to vector<16x128xbf16>
      %c0_21 = arith.constant 0 : index
      %c0_22 = arith.constant 0 : index
      %44 = vector.load %arg8[%c0_21, %c0_22] : memref<16x128xbf16, #tpu.memory_space<vmem>>, vector<16x128xbf16>
      tpu.vector_store %arg8[%c0_21, %c0_22], %43 {strides = array<i32>} : memref<16x128xbf16, #tpu.memory_space<vmem>>, vector<16x128xbf16>,
    } else {
    }
    %c0 = arith.constant 0 : index
    %c0_1 = arith.constant 0 : index
    %3 = vector.load %arg8[%c0, %c0_1] : memref<16x128xbf16, #tpu.memory_space<vmem>>, vector<16x128xbf16>
    %c0_2 = arith.constant 0 : index
    %c0_3 = arith.constant 0 : index
    %4 = vector.load %arg5[%c0_2, %c0_3] : memref<128x128xbf16, #tpu.memory_space<vmem>>, vector<128x128xbf16>
    %cst = arith.constant dense<0.000000e+00> : vector<16x128xf32>
    %5 = tpu.matmul %3, %4, %cst {dimension_numbers = #tpu.dot_dimension_numbers<[1], [0], [0], [1], [0, 0, 1, 1], [], []>} : vector<16x128xbf16>, vector<128x128xbf16>, vector<16x128xf32> -> vector<16x128xf32>
    %c0_4 = arith.constant 0 : index
    %c0_5 = arith.constant 0 : index
    %6 = vector.load %arg6[%c0_4, %c0_5] : memref<1x128xf32, #tpu.memory_space<vmem>>, vector<1x128xf32>
    %7 = vector.broadcast %6 : vector<1x128xf32> to vector<16x128xf32>
    %8 = arith.addf %5, %7 : vector<16x128xf32>
    %c128_i32 = arith.constant 128 : i32
    %9 = arith.muli %arg1, %c128_i32 : i32
    %10 = tpu.assume_multiple %9, 128 : i32
    %c0_6 = arith.constant 0 : index
    %11 = arith.index_cast %10 : i32 to index
    %12 = vector.load %arg2[%c0_6, %11] : memref<16x128xf32, #tpu.memory_space<vmem>>, vector<16x128xf32>
    %13 = arith.addf %12, %8 : vector<16x128xf32>
    %c0_7 = arith.constant 0 : index
    %c0_8 = arith.constant 0 : index
    %14 = vector.load %arg7[%c0_7, %c0_8] : memref<16x128xf32, #tpu.memory_space<vmem>>, vector<16x128xf32>
    tpu.vector_store %arg7[%c0_7, %c0_8], %13 {strides = array<i32>} : memref<16x128xf32, #tpu.memory_space<vmem>>, vector<16x128xf32>,
    return
  }
  func.func @transform_0(%arg0: i32, %arg1: i32) -> (i32, i32) {
    %c0_i32 = arith.constant 0 : i32
    %c0_i32_0 = arith.constant 0 : i32
    return %arg0, %c0_i32 : i32, i32
  }
  func.func @transform_1(%arg0: i32, %arg1: i32) -> (i32, i32) {
    %c0_i32 = arith.constant 0 : i32
    %c0_i32_0 = arith.constant 0 : i32
    %c0_i32_1 = arith.constant 0 : i32
    return %c0_i32, %c0_i32_0 : i32, i32
  }
  func.func @transform_2(%arg0: i32, %arg1: i32) -> (i32, i32) {
    %c0_i32 = arith.constant 0 : i32
    %c0_i32_0 = arith.constant 0 : i32
    %c0_i32_1 = arith.constant 0 : i32
    return %c0_i32, %c0_i32_0 : i32, i32
  }
  func.func @transform_3(%arg0: i32, %arg1: i32) -> (i32, i32) {
    %c0_i32 = arith.constant 0 : i32
    %c0_i32_0 = arith.constant 0 : i32
    %c0_i32_1 = arith.constant 0 : i32
    return %c0_i32, %c0_i32_0 : i32, i32
  }
  func.func @transform_4(%arg0: i32, %arg1: i32) -> (i32, i32) {
    %c0_i32 = arith.constant 0 : i32
    %c0_i32_0 = arith.constant 0 : i32
    %c0_i32_1 = arith.constant 0 : i32
    return %c0_i32, %c0_i32_0 : i32, i32
  }
  func.func @transform_5(%arg0: i32, %arg1: i32) -> (i32, i32) {
    %c0_i32 = arith.constant 0 : i32
    return %arg0, %arg1 : i32, i32
  }
}

</mosaic_0001>

<llo_original>
// kernel: residual_connection.1
$region0: #{residual_connection.1}
  #allocation0 [shape = 'u32[]', space=smem, size = 0x4, offset = 0x4, fixed_abs, tag = 'smem constant byte address 0x4 - core index']
  #allocation1 [shape = 'u32[144,128]{1,0:T(1,128)}', space=vmem, size = 0x12000, scoped, tag = 'internal scratch']
  #allocation2 [shape = 'bf16[16,128]{1,0:T(8,128)(2,1)}', space=vmem, size = 0x1000, scoped, tag = 'scratch operand']
  %s0 = inlined_call_operand.vmem [shape: f32[16,128], index: 0, kind: input, shape index: {}, may-alias: {0,5}]
  %s1 = inlined_call_operand.vmem [shape: f32[1,128], index: 1, kind: input, shape index: {}]
  %s2 = inlined_call_operand.vmem [shape: f32[1,128], index: 2, kind: input, shape index: {}]
  %s3 = inlined_call_operand.hbm [shape: bf16[128,128], index: 3, kind: input, shape index: {}]
  %s4 = inlined_call_operand.vmem [shape: f32[1,128], index: 4, kind: input, shape index: {}]
  %s5 = inlined_call_operand.vmem [shape: f32[16,128], index: 5, kind: output, shape index: {}, may-alias: {0,5}]
  %s6 = sld [smem:[#allocation0]]
  $region38: #{residual_connection.1} parent=0
    _
  %s8 = ssub.s32 1, %s6
  %s9 = scalar_select 0, %s8, %s6
  $region1: #{residual_connection.1} parent=0
    #allocation3 [shape = 'u8[32768]{0}', space=vmem, size = 0x8000, scoped, tag = 'input window, operand 3, single buffered']
    #allocation4 [shape = 's32[1]{0}', space=sflag, size = 0x4, scoped, tag = 'scoped memory for residual_connection.1']
    %10 = vsyncpa [#allocation4], 0
    // Predicated region
    $region2: #{residual_connection.1} parent=1 // pred_check
      _
    $region3: #{residual_connection.1} parent=1 // pred_check_branch
      %12 = sbr.rel (0) target = $region5
    $region4: #{residual_connection.1} parent=1 // pred_region
      _
    $region5: #{residual_connection.1} parent=1 // pred_fallthru
      _
    // Predicated region
    $region6: #{residual_connection.1} parent=1 // pred_check
      _
    $region7: #{residual_connection.1} parent=1 // pred_check_branch
      %14 = sbr.rel (0) target = $region9
    $region8: #{residual_connection.1} parent=1 // pred_region
      _
    $region9: #{residual_connection.1} parent=1 // pred_fallthru
      _
    // Predicated region
    $region10: #{residual_connection.1} parent=1 // pred_check
      _
    $region11: #{residual_connection.1} parent=1 // pred_check_branch
      %16 = sbr.rel (0) target = $region13
    $region12: #{residual_connection.1} parent=1 // pred_region
      _
    $region13: #{residual_connection.1} parent=1 // pred_fallthru
      _
    // Predicated region
    $region14: #{residual_connection.1} parent=1 // pred_check
      _
    $region15: #{residual_connection.1} parent=1 // pred_check_branch
      %18 = sbr.rel (0) target = $region17
    $region16: #{residual_connection.1} parent=1 // pred_region
      %s20 = ssub.s32 1024, 1024
      %21 = vsyncadd [#allocation4], %s20
      %s22 = sshll.u32 [#allocation3], 4
      %s23 = int_to_ptr.vmem [resolvable:$true] %s22
      %28 = dma.hbm_to_vmem [thread:$0]  %s3, 1024, %s23, [#allocation4], 64, 64, 4
    $region17: #{residual_connection.1} parent=1 // pred_fallthru
      _
    // Predicated region
    $region18: #{residual_connection.1} parent=1 // pred_check
      _
    $region19: #{residual_connection.1} parent=1 // pred_check_branch
      %30 = sbr.rel (0) target = $region21
    $region20: #{residual_connection.1} parent=1 // pred_region
      _
    $region21: #{residual_connection.1} parent=1 // pred_fallthru
      _
    // Predicated region
    $region22: #{residual_connection.1} parent=1 // pred_check
      _
    $region23: #{residual_connection.1} parent=1 // pred_check_branch
      %32 = sbr.rel (0) target = $region25
    $region24: #{residual_connection.1} parent=1 // pred_region
      %33 = dma.done [#allocation4], 1024
    $region25: #{residual_connection.1} parent=1 // pred_fallthru
      _
    %p35 = scmp.eq.s32.totalorder 0, 0
    // Predicated region
    $region26: #{residual_connection.1} parent=1 // pred_check
      %p36 = pneg %p35
    $region27: #{residual_connection.1} parent=1 // pred_check_branch
      %38 = sbr.rel (%p36) target = $region29
    $region28: #{residual_connection.1} parent=1 // pred_region
      %v39 = vld [vmem:[%s0] sm:$0xff]
      %v40 = vld [vmem:[%s0 + $0x8] sm:$0xff]
      %41 = vadd.xlane.f32.xlu0 %v39
      %v42 = vpop.xlane.xlu0 %41
      %43 = vadd.xlane.f32.xlu0 %v40
      %v44 = vpop.xlane.xlu0 %43
      %v45 = vmul.f32 %v42, 0.03125
      %v46 = vmul.f32 %v44, 0.03125
      %v47 = vsub.f32 %v39, %v45
      %v48 = vsub.f32 %v40, %v46
      %v49 = vlaneseq
      %v50 = vand.u32 %v49, 127
      %vm51 = vcmp.lt.s32.totalorder %v50, 32
      %v52 = vsel %vm51, %v47, 0.0
      %v53 = vsel %vm51, %v48, 0.0
      %v54 = vmul.f32 %v52, %v52
      %v55 = vmul.f32 %v53, %v53
      %56 = vadd.xlane.f32.xlu0 %v54
      %v57 = vpop.xlane.xlu0 %56
      %58 = vadd.xlane.f32.xlu0 %v55
      %v59 = vpop.xlane.xlu0 %58
      %v60 = vmul.f32 %v57, 0.03125
      %v61 = vmul.f32 %v59, 0.03125
      %v62 = vadd.f32 %v60, 1e-05
      %v63 = vadd.f32 %v61, 1e-05
      %v64 = vrsqrt.pop %v62
      %v65 = vrsqrt.pop %v63
      %v66 = vmul.f32 %v52, %v64
      %v67 = vmul.f32 %v53, %v65
      %v68 = vld [vmem:[%s1] sm:$0x1]
      %v70 = vlaneseq
      %v71 = vshrl.u32 %v70, 7
      %v72 = vsub.s32 0, %v71
      %v73 = vrot.slane %v68, %v72
      %v75 = vmul.f32 %v66, %v73
      %v76 = vmul.f32 %v67, %v73
      %v77 = vld [vmem:[%s2] sm:$0x1]
      %v79 = vlaneseq
      %v80 = vshrl.u32 %v79, 7
      %v81 = vsub.s32 0, %v80
      %v82 = vrot.slane %v77, %v81
      %v84 = vadd.f32 %v75, %v82
      %v85 = vadd.f32 %v76, %v82
      %v86 = vpack.c.bf16 %v85, %v84
      %v88 = vunpack.c.l.b16 %v86
      %v89 = vunpack.c.h.b16 %v86
      %v90 = vpack.c.b16 %v88, %v88
      %v91 = vpack.c.b16 %v89, %v89
      %94 = vst [vmem:[#allocation2] sm:$0xf] %v90
      %95 = vst [vmem:[#allocation2 + $0x4] sm:$0xf] %v91
    $region29: #{residual_connection.1} parent=1 // pred_fallthru
      _
    %v96 = vld [vmem:[#allocation2] sm:$0xf]
    %v97 = vld [vmem:[#allocation2 + $0x4] sm:$0xf]
    %v98 = vld [vmem:[#allocation3] sm:$0xf]
    %v99 = vld [vmem:[#allocation3 + $0x4] sm:$0xf]
    %v100 = vld [vmem:[#allocation3 + $0x8] sm:$0xf]
    %v101 = vld [vmem:[#allocation3 + $0xc] sm:$0xf]
    %v102 = vld [vmem:[#allocation3 + $0x10] sm:$0xf]
    %v103 = vld [vmem:[#allocation3 + $0x14] sm:$0xf]
    %v104 = vld [vmem:[#allocation3 + $0x18] sm:$0xf]
    %v105 = vld [vmem:[#allocation3 + $0x1c] sm:$0xf]
    %v106 = vld [vmem:[#allocation3 + $0x20] sm:$0xf]
    %v107 = vld [vmem:[#allocation3 + $0x24] sm:$0xf]
    %v108 = vld [vmem:[#allocation3 + $0x28] sm:$0xf]
    %v109 = vld [vmem:[#allocation3 + $0x2c] sm:$0xf]
    %v110 = vld [vmem:[#allocation3 + $0x30] sm:$0xf]
    %v111 = vld [vmem:[#allocation3 + $0x34] sm:$0xf]
    %v112 = vld [vmem:[#allocation3 + $0x38] sm:$0xf]
    %v113 = vld [vmem:[#allocation3 + $0x3c] sm:$0xf]
    %v114 = vld [vmem:[%s4] sm:$0x1]
    %v116 = vlaneseq
    %v117 = vshrl.u32 %v116, 7
    %v118 = vsub.s32 0, %v117
    %v119 = vrot.slane %v114, %v118
    %v123 = vunpack.c.l.b16 %v96
    %v124 = vunpack.c.l.b16 %v97
    %v125 = vpack.c.b16 %v124, %v123
    %v143 = vunpack.c.l.b16 %v98
    %v144 = vunpack.c.l.b16 %v99
    %v145 = vunpack.c.l.b16 %v100
    %v146 = vunpack.c.l.b16 %v101
    %v147 = vunpack.c.l.b16 %v102
    %v148 = vunpack.c.l.b16 %v103
    %v149 = vunpack.c.l.b16 %v104
    %v150 = vunpack.c.l.b16 %v105
    %v151 = vunpack.c.l.b16 %v106
    %v152 = vunpack.c.l.b16 %v107
    %v153 = vunpack.c.l.b16 %v108
    %v154 = vunpack.c.l.b16 %v109
    %v155 = vunpack.c.l.b16 %v110
    %v156 = vunpack.c.l.b16 %v111
    %v157 = vunpack.c.l.b16 %v112
    %v158 = vunpack.c.l.b16 %v113
    %v159 = vpack.c.b16 %v144, %v143
    %v160 = vpack.c.b16 %v146, %v145
    %v161 = vpack.c.b16 %v148, %v147
    %v162 = vpack.c.b16 %v150, %v149
    %v163 = vpack.c.b16 %v152, %v151
    %v164 = vpack.c.b16 %v154, %v153
    %v165 = vpack.c.b16 %v156, %v155
    %v166 = vpack.c.b16 %v158, %v157
    %175 = vmatprep.subr.bf16.mxu0 0
    %176 = vmatpush1.bf16.msra.mxu0 %v166
    %177 = vmatprep.subr.bf16.mxu0 0
    %178 = vmatpush1.bf16.msra.mxu0 %v165
    %179 = vmatprep.subr.bf16.mxu0 0
    %180 = vmatpush1.bf16.msra.mxu0 %v164
    %181 = vmatprep.subr.bf16.mxu0 0
    %182 = vmatpush1.bf16.msra.mxu0 %v163
    %183 = vmatprep.subr.bf16.mxu0 0
    %184 = vmatpush1.bf16.msra.mxu0 %v162
    %185 = vmatprep.subr.bf16.mxu0 0
    %186 = vmatpush1.bf16.msra.mxu0 %v161
    %187 = vmatprep.subr.bf16.mxu0 0
    %188 = vmatpush1.bf16.msra.mxu0 %v160
    %189 = vmatprep.subr.bf16.mxu0 0
    %190 = vmatpush1.bf16.msra.mxu0 %v159
    %191 = vmatprep.subr.bf16.mxu0 0
    %192 = vmatpush2.bf16.msra.mxu0 0
    %193 = vmatprep.subr.bf16.mxu0 0
    %194 = vmatpush2.bf16.msra.mxu0 0
    %195 = vmatprep.subr.bf16.mxu0 0
    %196 = vmatpush2.bf16.msra.mxu0 0
    %197 = vmatprep.subr.bf16.mxu0 0
    %198 = vmatpush2.bf16.msra.mxu0 0
    %199 = vmatprep.subr.bf16.mxu0 0
    %200 = vmatpush2.bf16.msra.mxu0 0
    %201 = vmatprep.subr.bf16.mxu0 0
    %202 = vmatpush2.bf16.msra.mxu0 0
    %203 = vmatprep.subr.bf16.mxu0 0
    %204 = vmatpush2.bf16.msra.mxu0 0
    %205 = vmatprep.subr.bf16.mxu0 0
    %206 = vmatpush2.bf16.msra.mxu0 0
    %207 = vmatprep.mubr.bf16.mxu0 0
    %208 = vmatmul.mubr.bf16.gmra.mxu0 %v125
    %v209 = vpop.f32.mrf.mxu0
    %v210 = vadd.f32 %v119, %v209
    %v211 = vpop.f32.mrf.mxu0
    %v212 = vpop.f32.mrf.mxu0
    %v213 = vadd.f32 %v119, %v212
    %v214 = vpop.f32.mrf.mxu0
    %215 = vdwg.mxu0
    %s216 = smul.u32 0, 128
    %s217 = sshra.s32 %s216, 7
    %s218 = sand.u32 %s216, 127
    %s219 = scalar_lea.vmem %s0, %s217
    %v220 = vld [vmem:[%s219] sm:$0xff]
    %v221 = vld [vmem:[%s219 + $0x8] sm:$0xff]
    %v222 = vadd.f32 %v220, %v210
    %v223 = vadd.f32 %v221, %v213
    %224 = vst [vmem:[%s5] sm:$0xff] %v222
    %225 = vst [vmem:[%s5 + $0x8] sm:$0xff] %v223
    // Predicated region
    $region30: #{residual_connection.1} parent=1 // pred_check
      _
    $region31: #{residual_connection.1} parent=1 // pred_check_branch
      %227 = sbr.rel (0) target = $region33
    $region32: #{residual_connection.1} parent=1 // pred_region
      _
    $region33: #{residual_connection.1} parent=1 // pred_fallthru
      _
    // Predicated region
    $region34: #{residual_connection.1} parent=1 // pred_check
      _
    $region35: #{residual_connection.1} parent=1 // pred_check_branch
      %229 = sbr.rel (0) target = $region37
    $region36: #{residual_connection.1} parent=1 // pred_region
      _
    $region37: #{residual_connection.1} parent=1 // pred_fallthru
      _
    %230 = vsyncpa [#allocation4], 1

</llo_original>
